<compile_context>
chip_gen: v7x
topology: tpu7x:2x2x1
jax: 0.10.0
libtpu: 0.0.40
codegen_flags: <defaults>
</compile_context>

<pallas_src>
import jax
import jax.numpy as jnp
from jax.experimental import pallas as pl
from jax.experimental.pallas import tpu as pltpu

FC_DIM = 6
ALPHA = 0.001


def _odefunc_kernel(w_ref, b_ref, xt_ref, o_ref):
    # w_ref : (FC_DIM, FC_DIM)  PyTorch nn.Linear weight (out, in)
    # b_ref : (FC_DIM, 1)       bias as a lane-broadcast column
    # xt_ref: (FC_DIM, TB)      transposed activation tile (batch on lanes)
    # o_ref : (FC_DIM, TB)
    w = w_ref[...]
    b = b_ref[...]
    xt = xt_ref[...]
    # y.T = W @ x.T + b   (MXU; contraction K = FC_DIM, lane dim = batch tile)
    y = jnp.dot(w, xt, preferred_element_type=jnp.float32) + b
    # Numerically stable softplus: max(y, 0) + log1p(exp(-|y|))
    sp = jnp.maximum(y, 0.0) + jnp.log1p(jnp.exp(-jnp.abs(y)))
    o_ref[...] = ALPHA * y + (1.0 - ALPHA) * sp


def odefunc_mlp_relu(t, x, weight, bias, *, tile_batch=32768):
    """JAX/Pallas equivalent of ODEfunc_mlp_relu.forward(t, x).

    t:      scalar (unused; kept for API parity with the PyTorch module)
    x:      (batch, FC_DIM) float32
    weight: (FC_DIM, FC_DIM) float32, PyTorch nn.Linear layout (out, in)
    bias:   (FC_DIM,) float32
    """
    del t  # t is ignored by ConcatFC / smooth_leaky_relu, exactly as in PyTorch
    batch, fc = x.shape

    # Feature-major (lane-dense) layout: batch lives on the 128-lane axis.
    xt = x.T                              # (fc, batch)
    b_col = bias.reshape(fc, 1)           # (fc, 1) column, broadcast along lanes

    if batch <= tile_batch:
        # Single block: block shape equals the full array dims (always legal).
        tb = batch
        padded = batch
    else:
        # Tile the batch axis; tile width is a multiple of 128 (lane-aligned).
        tb = tile_batch
        padded = pl.cdiv(batch, tb) * tb
        if padded != batch:
            xt = jnp.pad(xt, ((0, 0), (0, padded - batch)))

    grid = (padded // tb,)

    out_t = pl.pallas_call(
        _odefunc_kernel,
        out_shape=jax.ShapeDtypeStruct((fc, padded), jnp.float32),
        grid=grid,
        in_specs=[
            pl.BlockSpec((fc, fc), lambda i: (0, 0)),   # weight (VMEM-resident)
            pl.BlockSpec((fc, 1), lambda i: (0, 0)),    # bias   (VMEM-resident)
            pl.BlockSpec((fc, tb), lambda i: (0, i)),   # x.T tile over batch
        ],
        out_specs=pl.BlockSpec((fc, tb), lambda i: (0, i)),
        compiler_params=pltpu.CompilerParams(
            dimension_semantics=("parallel",),
        ),
    )(weight, b_col, xt)

    # Back to the PyTorch (batch, FC_DIM) layout, dropping any padding.
    return out_t[:, :batch].T


def _reference(t, x, weight, bias):
    y = x @ weight.T + bias
    # Same expression as the PyTorch module (naive softplus is fine at test scale).
    return ALPHA * y + (1.0 - ALPHA) * jnp.log(1.0 + jnp.exp(y))


if __name__ == "__main__":
    key = jax.random.PRNGKey(0)
    kx, kw, kb, kx2 = jax.random.split(key, 4)

    # Deterministic synthetic parameters (nn.Linear(fc_dim, fc_dim) shapes).
    weight = jax.random.normal(kw, (FC_DIM, FC_DIM), dtype=jnp.float32) * 0.4
    bias = jax.random.normal(kb, (FC_DIM,), dtype=jnp.float32) * 0.1
    t = jnp.float32(0.0)

    # Small batch: single-block path.
    batch = 8
    x = jax.random.normal(kx, (batch, FC_DIM), dtype=jnp.float32)
    out = jax.block_until_ready(odefunc_mlp_relu(t, x, weight, bias))
    ref = _reference(t, x, weight, bias)
    assert out.shape == (batch, FC_DIM)
    assert jnp.allclose(out, ref, atol=1e-5, rtol=1e-5), (
        f"max abs err {jnp.max(jnp.abs(out - ref))}"
    )

    # Larger batch: exercises the tiled (multi-block, padded) path.
    batch2 = 300
    x2 = jax.random.normal(kx2, (batch2, FC_DIM), dtype=jnp.float32)
    out2 = jax.block_until_ready(
        odefunc_mlp_relu(t, x2, weight, bias, tile_batch=128)
    )
    ref2 = _reference(t, x2, weight, bias)
    assert out2.shape == (batch2, FC_DIM)
    assert jnp.allclose(out2, ref2, atol=1e-5, rtol=1e-5), (
        f"max abs err {jnp.max(jnp.abs(out2 - ref2))}"
    )

    print("KERNEL_OK")
</pallas_src>

<mosaic_0001>
module attributes {stable_mosaic.version = 11 : i64} {
  func.func @_odefunc_kernel(%arg0: i32, %arg1: memref<6x6xf32, #tpu.memory_space<vmem>>, %arg2: memref<6x1xf32, #tpu.memory_space<vmem>>, %arg3: memref<6x8xf32, #tpu.memory_space<vmem>>, %arg4: memref<6x8xf32, #tpu.memory_space<vmem>>) attributes {dimension_semantics = [#tpu.dimension_semantics<parallel>], iteration_bounds = array<i64: 1>, scalar_prefetch = 0 : i64, scratch_operands = 0 : i64, tpu.core_type = #tpu.core_type<tc>, window_params = [{pipeline_mode = #tpu.pipeline_mode<synchronous>, transform_indices = @transform_0, window_bounds = array<i64: 6, 6>}, {pipeline_mode = #tpu.pipeline_mode<synchronous>, transform_indices = @transform_1, window_bounds = array<i64: 6, 1>}, {transform_indices = @transform_2, window_bounds = array<i64: 6, 8>}, {transform_indices = @transform_3, window_bounds = array<i64: 6, 8>}]} {
    %c0 = arith.constant 0 : index
    %c0_0 = arith.constant 0 : index
    %0 = vector.load %arg1[%c0, %c0_0] : memref<6x6xf32, #tpu.memory_space<vmem>>, vector<6x6xf32>
    %c0_1 = arith.constant 0 : index
    %c0_2 = arith.constant 0 : index
    %1 = vector.load %arg2[%c0_1, %c0_2] : memref<6x1xf32, #tpu.memory_space<vmem>>, vector<6x1xf32>
    %c0_3 = arith.constant 0 : index
    %c0_4 = arith.constant 0 : index
    %2 = vector.load %arg3[%c0_3, %c0_4] : memref<6x8xf32, #tpu.memory_space<vmem>>, vector<6x8xf32>
    %cst = arith.constant dense<0.000000e+00> : vector<6x8xf32>
    %3 = tpu.matmul %0, %2, %cst {dimension_numbers = #tpu.dot_dimension_numbers<[1], [0], [0], [1], [0, 0, 1, 1], [], []>} : vector<6x6xf32>, vector<6x8xf32>, vector<6x8xf32> -> vector<6x8xf32>
    %4 = vector.broadcast %1 : vector<6x1xf32> to vector<6x8xf32>
    %5 = arith.addf %3, %4 : vector<6x8xf32>
    %cst_5 = arith.constant 0.000000e+00 : f32
    %6 = vector.broadcast %cst_5 : f32 to vector<6x8xf32>
    %7 = arith.maximumf %5, %6 : vector<6x8xf32>
    %8 = math.absf %5 : vector<6x8xf32>
    %cst_6 = arith.constant 0.000000e+00 : f32
    %9 = vector.broadcast %cst_6 : f32 to vector<6x8xf32>
    %10 = arith.subf %9, %8 : vector<6x8xf32>
    %11 = math.exp %10 : vector<6x8xf32>
    %12 = math.log1p %11 : vector<6x8xf32>
    %13 = arith.addf %7, %12 : vector<6x8xf32>
    %cst_7 = arith.constant 1.000000e-03 : f32
    %14 = vector.broadcast %cst_7 : f32 to vector<6x8xf32>
    %15 = arith.mulf %14, %5 : vector<6x8xf32>
    %cst_8 = arith.constant 9.990000e-01 : f32
    %16 = vector.broadcast %cst_8 : f32 to vector<6x8xf32>
    %17 = arith.mulf %16, %13 : vector<6x8xf32>
    %18 = arith.addf %15, %17 : vector<6x8xf32>
    %c0_9 = arith.constant 0 : index
    %c0_10 = arith.constant 0 : index
    %19 = vector.load %arg4[%c0_9, %c0_10] : memref<6x8xf32, #tpu.memory_space<vmem>>, vector<6x8xf32>
    tpu.vector_store %arg4[%c0_9, %c0_10], %18 {strides = array<i32>} : memref<6x8xf32, #tpu.memory_space<vmem>>, vector<6x8xf32>,
    return
  }
  func.func @transform_0(%arg0: i32) -> (i32, i32) {
    %c0_i32 = arith.constant 0 : i32
    %c0_i32_0 = arith.constant 0 : i32
    %c0_i32_1 = arith.constant 0 : i32
    return %c0_i32, %c0_i32_0 : i32, i32
  }
  func.func @transform_1(%arg0: i32) -> (i32, i32) {
    %c0_i32 = arith.constant 0 : i32
    %c0_i32_0 = arith.constant 0 : i32
    %c0_i32_1 = arith.constant 0 : i32
    return %c0_i32, %c0_i32_0 : i32, i32
  }
  func.func @transform_2(%arg0: i32) -> (i32, i32) {
    %c0_i32 = arith.constant 0 : i32
    %c0_i32_0 = arith.constant 0 : i32
    return %c0_i32, %arg0 : i32, i32
  }
  func.func @transform_3(%arg0: i32) -> (i32, i32) {
    %c0_i32 = arith.constant 0 : i32
    %c0_i32_0 = arith.constant 0 : i32
    return %c0_i32, %arg0 : i32, i32
  }
}

</mosaic_0001>

<llo_original>
// kernel: tpu_custom_call.1
$region0: #{tpu_custom_call.1}
  #allocation0 [shape = 'u32[]', space=smem, size = 0x4, offset = 0x4, fixed_abs, tag = 'smem constant byte address 0x4 - core index']
  #allocation1 [shape = 'u32[144,128]{1,0:T(1,128)}', space=vmem, size = 0x12000, scoped, tag = 'internal scratch']
  %s0 = inlined_call_operand.vmem [shape: f32[6,6], index: 0, kind: input, shape index: {}]
  %s1 = inlined_call_operand.vmem [shape: f32[6,1], index: 1, kind: input, shape index: {}]
  %s2 = inlined_call_operand.vmem [shape: f32[6,8], index: 2, kind: input, shape index: {}]
  %s3 = inlined_call_operand.hbm [shape: f32[6,8], index: 3, kind: output, shape index: {}]
  %s4 = sld [smem:[#allocation0]]
  $region22: #{tpu_custom_call.1} parent=0
    _
  %s6 = ssub.s32 1, %s4
  %s7 = scalar_select 0, %s6, %s4
  $region1: #{tpu_custom_call.1} parent=0
    #allocation2 [shape = 'u8[4096]{0}', space=vmem, size = 0x1000, scoped, tag = 'output window, operand 0, single buffered']
    #allocation3 [shape = 's32[1]{0}', space=sflag, size = 0x4, scoped, tag = 'scoped memory for tpu_custom_call.1']
    %8 = vsyncpa [#allocation3], 0
    // Predicated region
    $region2: #{tpu_custom_call.1} parent=1 // pred_check
      _
    $region3: #{tpu_custom_call.1} parent=1 // pred_check_branch
      %10 = sbr.rel (0) target = $region5
    $region4: #{tpu_custom_call.1} parent=1 // pred_region
      _
    $region5: #{tpu_custom_call.1} parent=1 // pred_fallthru
      _
    // Predicated region
    $region6: #{tpu_custom_call.1} parent=1 // pred_check
      _
    $region7: #{tpu_custom_call.1} parent=1 // pred_check_branch
      %12 = sbr.rel (0) target = $region9
    $region8: #{tpu_custom_call.1} parent=1 // pred_region
      _
    $region9: #{tpu_custom_call.1} parent=1 // pred_fallthru
      _
    // Predicated region
    $region10: #{tpu_custom_call.1} parent=1 // pred_check
      _
    $region11: #{tpu_custom_call.1} parent=1 // pred_check_branch
      %14 = sbr.rel (0) target = $region13
    $region12: #{tpu_custom_call.1} parent=1 // pred_region
      _
    $region13: #{tpu_custom_call.1} parent=1 // pred_fallthru
      _
    %v15 = vld [vmem:[%s0] sm:$0x3f]
    %v16 = vld [vmem:[%s1] sm:$0x3f]
    %v17 = vld [vmem:[%s2] sm:$0x3f]
    %19 = vset.pattern.permute.xlu0 0
    %20 = vperm.xlu0 %19, %v16
    %v21 = vpop.permute.xlu0 %20
    %vm23 = vcmask 48128
    %v25 = vsel %vm23, %v15, 0
    %vm27 = vcmask 1045504
    %v29 = vsel %vm27, %v17, 0
    %31 = vmatprep.subr.mxu0 0.0
    %32 = vmatpush1.msra.mxu0 %v29
    %33 = vmatprep.subr.mxu0 0.0
    %34 = vmatpush1.msra.mxu0 0.0
    %35 = vmatprep.subr.mxu0 0.0
    %36 = vmatpush1.msra.mxu0 0.0
    %37 = vmatprep.subr.mxu0 0.0
    %38 = vmatpush1.msra.mxu0 0.0
    %39 = vmatprep.subr.mxu0 0.0
    %40 = vmatpush1.msra.mxu0 0.0
    %41 = vmatprep.subr.mxu0 0.0
    %42 = vmatpush1.msra.mxu0 0.0
    %43 = vmatprep.subr.mxu0 0.0
    %44 = vmatpush1.msra.mxu0 0.0
    %45 = vmatprep.subr.mxu0 0.0
    %46 = vmatpush1.msra.mxu0 0.0
    %47 = vmatprep.subr.mxu0 0.0
    %48 = vmatpush1.msra.mxu0 0.0
    %49 = vmatprep.subr.mxu0 0.0
    %50 = vmatpush1.msra.mxu0 0.0
    %51 = vmatprep.subr.mxu0 0.0
    %52 = vmatpush1.msra.mxu0 0.0
    %53 = vmatprep.subr.mxu0 0.0
    %54 = vmatpush1.msra.mxu0 0.0
    %55 = vmatprep.subr.mxu0 0.0
    %56 = vmatpush1.msra.mxu0 0.0
    %57 = vmatprep.subr.mxu0 0.0
    %58 = vmatpush1.msra.mxu0 0.0
    %59 = vmatprep.subr.mxu0 0.0
    %60 = vmatpush1.msra.mxu0 0.0
    %61 = vmatprep.subr.mxu0 0.0
    %62 = vmatpush1.msra.mxu0 0.0
    %63 = vmatprep.subr.mxu0 0.0
    %64 = vmatpush1.msra.mxu0 0.0
    %65 = vmatprep.subr.mxu0 0.0
    %66 = vmatpush1.msra.mxu0 0.0
    %67 = vmatprep.subr.mxu0 0.0
    %68 = vmatpush1.msra.mxu0 0.0
    %69 = vmatprep.subr.mxu0 0.0
    %70 = vmatpush1.msra.mxu0 0.0
    %71 = vmatprep.subr.mxu0 0.0
    %72 = vmatpush1.msra.mxu0 0.0
    %73 = vmatprep.subr.mxu0 0.0
    %74 = vmatpush1.msra.mxu0 0.0
    %75 = vmatprep.subr.mxu0 0.0
    %76 = vmatpush1.msra.mxu0 0.0
    %77 = vmatprep.subr.mxu0 0.0
    %78 = vmatpush1.msra.mxu0 0.0
    %79 = vmatprep.subr.mxu0 0.0
    %80 = vmatpush1.msra.mxu0 0.0
    %81 = vmatprep.subr.mxu0 0.0
    %82 = vmatpush1.msra.mxu0 0.0
    %83 = vmatprep.subr.mxu0 0.0
    %84 = vmatpush1.msra.mxu0 0.0
    %85 = vmatprep.subr.mxu0 0.0
    %86 = vmatpush1.msra.mxu0 0.0
    %87 = vmatprep.subr.mxu0 0.0
    %88 = vmatpush1.msra.mxu0 0.0
    %89 = vmatprep.subr.mxu0 0.0
    %90 = vmatpush1.msra.mxu0 0.0
    %91 = vmatprep.subr.mxu0 0.0
    %92 = vmatpush1.msra.mxu0 0.0
    %93 = vmatprep.subr.mxu0 0.0
    %94 = vmatpush1.msra.mxu0 0.0
    %95 = vmatprep.mubr.f32.mxu0 0.0
    %96 = vmatmul.mubr.f32.gmra.mrb[0].mxu0 %v25
    %v97 = vpop.f32.mrb[0].mxu0
    %v98 = vadd.f32 %v21, %v97
    %v99 = vpop.f32.mrb[0].mxu0
    %100 = vdwg.mxu0
    %v101 = vmax.f32 %v98, 0.0
    %v102 = vand.u32 2147483647, %v98
    %v103 = vsub.f32 0.0, %v102
    %v104 = vmul.f32 %v103, 1.442695
    %v105 = vpow.pop %v104
    %v106 = vadd.f32 %v105, 1.0
    %v107 = vlog2.pop %v106
    %v108 = vmul.f32 %v107, 0.6931472
    %v109 = vmul.f32 -0.5, %v105
    %v110 = vadd.f32 %v109, 1.0
    %v111 = vmul.f32 %v110, %v105
    %v112 = vand.u32 2147483647, %v105
    %vm113 = vcmp.lt.f32.partialorder %v112, 0.0004427343
    %v114 = vsel %vm113, %v111, %v108
    %v115 = vadd.f32 %v101, %v114
    %v116 = vmul.f32 %v98, 0.001
    %v117 = vmul.f32 %v115, 0.999
    %v118 = vadd.f32 %v116, %v117
    %vm119 = vcmask 62464
    %120 = vst.msk [vmem:[#allocation2] sm:$0x3f] %vm119, %v118
    // Predicated region
    $region14: #{tpu_custom_call.1} parent=1 // pred_check
      _
    $region15: #{tpu_custom_call.1} parent=1 // pred_check_branch
      %122 = sbr.rel (0) target = $region17
    $region16: #{tpu_custom_call.1} parent=1 // pred_region
      %s124 = ssub.s32 128, 128
      %125 = vsyncadd [#allocation3], %s124
      %s127 = sshll.u32 [#allocation2], 4
      %s128 = int_to_ptr.vmem [resolvable:$true] %s127
      %130 = dma.vmem_to_hbm [thread:$0]  %s128, 128, %s3, [#allocation3]
    $region17: #{tpu_custom_call.1} parent=1 // pred_fallthru
      _
    // Predicated region
    $region18: #{tpu_custom_call.1} parent=1 // pred_check
      _
    $region19: #{tpu_custom_call.1} parent=1 // pred_check_branch
      %132 = sbr.rel (0) target = $region21
    $region20: #{tpu_custom_call.1} parent=1 // pred_region
      %133 = dma.done [#allocation3], 128
    $region21: #{tpu_custom_call.1} parent=1 // pred_fallthru
      _
    %134 = vsyncpa [#allocation3], 1

</llo_original>
